<compile_context>
chip_gen: v6e
topology: v6e:2x2x1
jax: 0.10.0
libtpu: 0.0.40
codegen_flags: <defaults>
</compile_context>

<pallas_src>
import functools

import jax
import jax.numpy as jnp
from jax.experimental import pallas as pl
from jax.experimental.pallas import tpu as pltpu


def _round_up(x, m):
    return -(-x // m) * m


def _scl2_kernel(scale, q_ref, kt_ref, bias_ref, a_ref, c_ref, loss_ref,
                 m_ref, l_ref):
    """Online logsumexp over column tiles of the (B, B) score matrix.

    Per step: one MXU matmul, one broadcast bias add, one row max, one exp and
    one row sum.  All mask-related work is precomputed in the wrapper.
    """
    k_idx = pl.program_id(1)

    @pl.when(k_idx == 0)
    def _init():
        m_ref[...] = jnp.full(m_ref.shape, -1e30, dtype=m_ref.dtype)
        l_ref[...] = jnp.zeros(l_ref.shape, dtype=l_ref.dtype)

    # (TQ, D) x (D, TK) -> (TQ, TK) f32 on the MXU; Q already carries 1/T.
    s = jnp.dot(q_ref[...], kt_ref[...], preferred_element_type=jnp.float32)
    s = s + bias_ref[...]              # -1e30 additive bias on padded columns

    m_prev = m_ref[...]
    m_new = jnp.maximum(m_prev, jnp.max(s, axis=1, keepdims=True))
    alpha = jnp.exp(m_prev - m_new)
    l_ref[...] = alpha * l_ref[...] + jnp.sum(jnp.exp(s - m_new),
                                              axis=1, keepdims=True)
    m_ref[...] = m_new

    @pl.when(k_idx == pl.num_programs(1) - 1)
    def _finalize():
        # reference: log_prob = s - max - log(sum exp(s - max) + 1e-6)
        log_denom = m_ref[...] + jnp.log(l_ref[...] + 1e-6)
        # a = sum_j mask*s / num_pairs (exact, wrapper);  c = 1 if any pair.
        loss_ref[...] = scale * (a_ref[...] - c_ref[...] * log_denom)


def scl2_loss(features, labels, temperature=0.5, base_temperature=0.5,
              tq=512, tk=512):
    """Pallas implementation of SCL2.forward. features: [B, D], labels: [B].

    Returns loss of shape (B,) (matches loss.view(1, B).squeeze() for B > 1).
    """
    B, D = features.shape
    labels = jnp.asarray(labels, jnp.float32).reshape(-1)
    if labels.shape[0] != B:
        raise ValueError("Num of labels does not match num of features")

    inv_t = 1.0 / float(temperature)
    scale = float(temperature) / float(base_temperature)

    d_pad = _round_up(D, 128)
    # Clamp tiles to the (padded) problem so small batches stay small.
    tq = min(tq, _round_up(B, 8))
    tk = min(tk, _round_up(B, 128))

    def vmem_est(q_t, k_t):
        # double-buffered bf16 feature tiles + ~4 live (tq, tk) f32 temporaries
        return 4 * (q_t + k_t) * d_pad + 16 * q_t * k_t

    budget = 40 << 20                     # v7x-safe (64 MiB physical VMEM)
    while vmem_est(tq, tk) > budget and tq > 256 and tq % 32 == 0:
        tq //= 2
    while vmem_est(tq, tk) > budget and tk > 256 and tk % 256 == 0:
        tk //= 2
    vmem_limit = int(min(max(vmem_est(tq, tk) + (8 << 20), 32 << 20), 56 << 20))

    rows = _round_up(B, tq)
    cols = _round_up(B, tk)

    f32 = jnp.asarray(features, jnp.float32)
    keys_bf = f32.astype(jnp.bfloat16)                   # K side (unscaled)
    q_bf = (f32 * inv_t).astype(jnp.bfloat16)            # Q side carries 1/T

    # --- row-separable masked-score sums, hoisted out of the kernel ---------
    # mask[i, j] = float((1 - label_i) == label_j); labels are {0.0, 1.0}.
    # TODO(synk): the pooled-feature shortcut assumes binary {0, 1} labels
    # (the `1 - labels` reference semantics); arbitrary float labels would
    # need the per-tile mask accumulation of the previous version.
    keys_f32 = keys_bf.astype(jnp.float32)
    is0 = (labels == 0.0)
    is1 = (labels == 1.0)
    pooled0 = jnp.sum(jnp.where(is0[:, None], keys_f32, 0.0), axis=0)   # (D,)
    pooled1 = jnp.sum(jnp.where(is1[:, None], keys_f32, 0.0), axis=0)   # (D,)
    n0 = jnp.sum(is0.astype(jnp.float32))
    n1 = jnp.sum(is1.astype(jnp.float32))
    tgt = 1.0 - labels
    tgt_pooled = jnp.where((tgt == 1.0)[:, None], pooled1[None, :],
                           jnp.where((tgt == 0.0)[:, None],
                                     pooled0[None, :], 0.0))            # (B,D)
    num_pairs = jnp.where(tgt == 1.0, n1, jnp.where(tgt == 0.0, n0, 0.0))
    sms = jnp.sum(q_bf.astype(jnp.float32) * tgt_pooled, axis=1)  # sum mask*s
    np_safe = jnp.where(num_pairs < 1e-6, 1.0, num_pairs)
    a = (sms / np_safe).reshape(B, 1).astype(jnp.float32)     # exact divide
    c = (num_pairs >= 0.5).astype(jnp.float32).reshape(B, 1)

    # --- pad operands (rows / cols / feature dim padded independently) ------
    q_p = jnp.pad(q_bf, ((0, rows - B), (0, d_pad - D)))
    kt_p = jnp.pad(keys_bf, ((0, cols - B), (0, d_pad - D))).T  # (d_pad, cols)
    bias = jnp.where(jnp.arange(cols) < B, 0.0, -1e30)
    bias = bias.astype(jnp.float32).reshape(1, cols)
    a_p = jnp.pad(a, ((0, rows - B), (0, 0)))
    c_p = jnp.pad(c, ((0, rows - B), (0, 0)))

    grid = (rows // tq, cols // tk)
    kernel = functools.partial(_scl2_kernel, scale)

    loss_col = pl.pallas_call(
        kernel,
        out_shape=jax.ShapeDtypeStruct((rows, 1), jnp.float32),
        grid_spec=pltpu.PrefetchScalarGridSpec(
            num_scalar_prefetch=0,
            grid=grid,
            in_specs=[
                pl.BlockSpec((tq, d_pad), lambda i, k: (i, 0)),   # Q rows
                pl.BlockSpec((d_pad, tk), lambda i, k: (0, k)),   # K^T cols
                pl.BlockSpec((1, tk), lambda i, k: (0, k)),       # pad bias
                pl.BlockSpec((tq, 1), lambda i, k: (i, 0)),       # mean pos s
                pl.BlockSpec((tq, 1), lambda i, k: (i, 0)),       # has-pairs
            ],
            out_specs=pl.BlockSpec((tq, 1), lambda i, k: (i, 0)),
            scratch_shapes=[pltpu.VMEM((tq, 1), jnp.float32),     # running max
                            pltpu.VMEM((tq, 1), jnp.float32)],    # exp-sum
        ),
        compiler_params=pltpu.CompilerParams(
            dimension_semantics=("parallel", "arbitrary"),
            vmem_limit_bytes=vmem_limit),
    )(q_p, kt_p, bias, a_p, c_p)

    # TODO(synk): for B == 1 the PyTorch reference returns a 0-d scalar via
    # .squeeze(); here we always return shape (B,).
    return loss_col[:B, 0]


def _scl2_ref(features, labels, temperature=0.5, base_temperature=0.5,
              matmul_dtype=jnp.bfloat16):
    """Pure-JAX reference mirroring the PyTorch code (bf16 MXU-matched matmul)."""
    B = features.shape[0]
    lab = labels.astype(jnp.float32).reshape(B, 1)
    mask = ((1.0 - lab) == lab.T).astype(jnp.float32)
    f = features.astype(matmul_dtype)
    adc = jnp.matmul(f, f.T, preferred_element_type=jnp.float32) / temperature
    logits_max = jnp.max(adc, axis=1, keepdims=True)
    logits = adc - logits_max
    exp_logits = jnp.exp(logits)
    log_prob = logits - jnp.log(jnp.sum(exp_logits, axis=1, keepdims=True) + 1e-6)
    mnp = jnp.sum(mask, axis=1)
    mnp = jnp.where(mnp < 1e-6, 1.0, mnp)
    mean_log_prob_pos = jnp.sum(mask * log_prob, axis=1) / mnp
    return (temperature / base_temperature) * mean_log_prob_pos


if __name__ == "__main__":
    key = jax.random.PRNGKey(0)
    kf, kl, kf2, kl2 = jax.random.split(key, 4)

    # Small shape (default tiles clamp down to a single tile pair).
    B, D = 8, 32
    features = jax.random.normal(kf, (B, D), dtype=jnp.float32)
    labels = jax.random.randint(kl, (B,), 0, 2).astype(jnp.float32)

    loss = scl2_loss(features, labels, temperature=0.5, base_temperature=0.5)
    loss = jax.block_until_ready(loss)
    ref = _scl2_ref(features, labels, temperature=0.5, base_temperature=0.5)
    assert loss.shape == (B,)
    assert jnp.allclose(loss, ref, atol=5e-3, rtol=5e-3), (loss, ref)

    # Slightly larger, non-tile-aligned shape exercising the multi-column-tile
    # online accumulation, padding bias and the parallel row axis.
    B2, D2 = 272, 72
    features2 = jax.random.normal(kf2, (B2, D2), dtype=jnp.float32)
    labels2 = jax.random.randint(kl2, (B2,), 0, 2).astype(jnp.float32)
    loss2 = scl2_loss(features2, labels2, temperature=0.5,
                      base_temperature=0.5, tq=128, tk=128)
    loss2 = jax.block_until_ready(loss2)
    ref2 = _scl2_ref(features2, labels2, temperature=0.5, base_temperature=0.5)
    assert loss2.shape == (B2,)
    assert jnp.allclose(loss2, ref2, atol=5e-3, rtol=5e-3), (
        jnp.max(jnp.abs(loss2 - ref2)))

    print("KERNEL_OK")
</pallas_src>

<mosaic_0001>
module attributes {stable_mosaic.version = 11 : i64} {
  func.func @_scl2_kernel(%arg0: i32, %arg1: i32, %arg2: memref<8x128xbf16, #tpu.memory_space<vmem>>, %arg3: memref<128x128xbf16, #tpu.memory_space<vmem>>, %arg4: memref<1x128xf32, #tpu.memory_space<vmem>>, %arg5: memref<8x1xf32, #tpu.memory_space<vmem>>, %arg6: memref<8x1xf32, #tpu.memory_space<vmem>>, %arg7: memref<8x1xf32, #tpu.memory_space<vmem>>, %arg8: memref<8x1xf32, #tpu.memory_space<vmem>>, %arg9: memref<8x1xf32, #tpu.memory_space<vmem>>) attributes {dimension_semantics = [#tpu.dimension_semantics<parallel>, #tpu.dimension_semantics<arbitrary>], iteration_bounds = array<i64: 1, 1>, scalar_prefetch = 0 : i64, scratch_operands = 2 : i64, tpu.core_type = #tpu.core_type<tc>, window_params = [{transform_indices = @transform_0, window_bounds = array<i64: 8, 128>}, {transform_indices = @transform_1, window_bounds = array<i64: 128, 128>}, {transform_indices = @transform_2, window_bounds = array<i64: 1, 128>}, {transform_indices = @transform_3, window_bounds = array<i64: 8, 1>}, {transform_indices = @transform_4, window_bounds = array<i64: 8, 1>}, {transform_indices = @transform_5, window_bounds = array<i64: 8, 1>}]} {
    %c0_i32 = arith.constant 0 : i32
    %0 = arith.cmpi eq, %arg1, %c0_i32 : i32
    %1 = arith.extui %0 : i1 to i32
    %c0_i32_0 = arith.constant 0 : i32
    %2 = arith.cmpi ne, %1, %c0_i32_0 : i32
    scf.if %2 {
      %cst_18 = arith.constant -1.000000e+30 : f32
      %28 = vector.broadcast %cst_18 : f32 to vector<8x1xf32>
      %c0_19 = arith.constant 0 : index
      %c0_20 = arith.constant 0 : index
      %29 = vector.load %arg8[%c0_19, %c0_20] : memref<8x1xf32, #tpu.memory_space<vmem>>, vector<8x1xf32>
      tpu.vector_store %arg8[%c0_19, %c0_20], %28 {strides = array<i32>} : memref<8x1xf32, #tpu.memory_space<vmem>>, vector<8x1xf32>,
      %cst_21 = arith.constant 0.000000e+00 : f32
      %30 = vector.broadcast %cst_21 : f32 to vector<8x1xf32>
      %c0_22 = arith.constant 0 : index
      %c0_23 = arith.constant 0 : index
      %31 = vector.load %arg9[%c0_22, %c0_23] : memref<8x1xf32, #tpu.memory_space<vmem>>, vector<8x1xf32>
      tpu.vector_store %arg9[%c0_22, %c0_23], %30 {strides = array<i32>} : memref<8x1xf32, #tpu.memory_space<vmem>>, vector<8x1xf32>,
    } else {
    }
    %c0 = arith.constant 0 : index
    %c0_1 = arith.constant 0 : index
    %3 = vector.load %arg2[%c0, %c0_1] : memref<8x128xbf16, #tpu.memory_space<vmem>>, vector<8x128xbf16>
    %c0_2 = arith.constant 0 : index
    %c0_3 = arith.constant 0 : index
    %4 = vector.load %arg3[%c0_2, %c0_3] : memref<128x128xbf16, #tpu.memory_space<vmem>>, vector<128x128xbf16>
    %cst = arith.constant dense<0.000000e+00> : vector<8x128xf32>
    %5 = tpu.matmul %3, %4, %cst {dimension_numbers = #tpu.dot_dimension_numbers<[1], [0], [0], [1], [0, 0, 1, 1], [], []>} : vector<8x128xbf16>, vector<128x128xbf16>, vector<8x128xf32> -> vector<8x128xf32>
    %c0_4 = arith.constant 0 : index
    %c0_5 = arith.constant 0 : index
    %6 = vector.load %arg4[%c0_4, %c0_5] : memref<1x128xf32, #tpu.memory_space<vmem>>, vector<1x128xf32>
    %7 = vector.broadcast %6 : vector<1x128xf32> to vector<8x128xf32>
    %8 = arith.addf %5, %7 : vector<8x128xf32>
    %c0_6 = arith.constant 0 : index
    %c0_7 = arith.constant 0 : index
    %9 = vector.load %arg8[%c0_6, %c0_7] : memref<8x1xf32, #tpu.memory_space<vmem>>, vector<8x1xf32>
    %cst_8 = arith.constant dense<0xFF800000> : vector<8xf32>
    %10 = vector.multi_reduction <maximumf>, %8, %cst_8 [1] : vector<8x128xf32> to vector<8xf32>
    %11 = vector.shape_cast %10 : vector<8xf32> to vector<8x1xf32>
    %12 = arith.maximumf %9, %11 : vector<8x1xf32>
    %13 = arith.subf %9, %12 : vector<8x1xf32>
    %14 = math.exp %13 : vector<8x1xf32>
    %c0_9 = arith.constant 0 : index
    %c0_10 = arith.constant 0 : index
    %15 = vector.load %arg9[%c0_9, %c0_10] : memref<8x1xf32, #tpu.memory_space<vmem>>, vector<8x1xf32>
    %16 = arith.mulf %14, %15 : vector<8x1xf32>
    %17 = vector.broadcast %12 : vector<8x1xf32> to vector<8x128xf32>
    %18 = arith.subf %8, %17 : vector<8x128xf32>
    %19 = math.exp %18 : vector<8x128xf32>
    %cst_11 = arith.constant dense<0.000000e+00> : vector<8xf32>
    %20 = vector.multi_reduction <add>, %19, %cst_11 [1] : vector<8x128xf32> to vector<8xf32>
    %21 = vector.shape_cast %20 : vector<8xf32> to vector<8x1xf32>
    %22 = arith.addf %16, %21 : vector<8x1xf32>
    %c0_12 = arith.constant 0 : index
    %c0_13 = arith.constant 0 : index
    %23 = vector.load %arg9[%c0_12, %c0_13] : memref<8x1xf32, #tpu.memory_space<vmem>>, vector<8x1xf32>
    tpu.vector_store %arg9[%c0_12, %c0_13], %22 {strides = array<i32>} : memref<8x1xf32, #tpu.memory_space<vmem>>, vector<8x1xf32>,
    %c0_14 = arith.constant 0 : index
    %c0_15 = arith.constant 0 : index
    %24 = vector.load %arg8[%c0_14, %c0_15] : memref<8x1xf32, #tpu.memory_space<vmem>>, vector<8x1xf32>
    tpu.vector_store %arg8[%c0_14, %c0_15], %12 {strides = array<i32>} : memref<8x1xf32, #tpu.memory_space<vmem>>, vector<8x1xf32>,
    %c0_i32_16 = arith.constant 0 : i32
    %25 = arith.cmpi eq, %arg1, %c0_i32_16 : i32
    %26 = arith.extui %25 : i1 to i32
    %c0_i32_17 = arith.constant 0 : i32
    %27 = arith.cmpi ne, %26, %c0_i32_17 : i32
    scf.if %27 {
      %c0_18 = arith.constant 0 : index
      %c0_19 = arith.constant 0 : index
      %28 = vector.load %arg8[%c0_18, %c0_19] : memref<8x1xf32, #tpu.memory_space<vmem>>, vector<8x1xf32>
      %c0_20 = arith.constant 0 : index
      %c0_21 = arith.constant 0 : index
      %29 = vector.load %arg9[%c0_20, %c0_21] : memref<8x1xf32, #tpu.memory_space<vmem>>, vector<8x1xf32>
      %cst_22 = arith.constant 9.99999997E-7 : f32
      %30 = vector.broadcast %cst_22 : f32 to vector<8x1xf32>
      %31 = arith.addf %29, %30 : vector<8x1xf32>
      %32 = math.log %31 : vector<8x1xf32>
      %33 = arith.addf %28, %32 : vector<8x1xf32>
      %c0_23 = arith.constant 0 : index
      %c0_24 = arith.constant 0 : index
      %34 = vector.load %arg5[%c0_23, %c0_24] : memref<8x1xf32, #tpu.memory_space<vmem>>, vector<8x1xf32>
      %c0_25 = arith.constant 0 : index
      %c0_26 = arith.constant 0 : index
      %35 = vector.load %arg6[%c0_25, %c0_26] : memref<8x1xf32, #tpu.memory_space<vmem>>, vector<8x1xf32>
      %36 = arith.mulf %35, %33 : vector<8x1xf32>
      %37 = arith.subf %34, %36 : vector<8x1xf32>
      %cst_27 = arith.constant 1.000000e+00 : f32
      %38 = vector.broadcast %cst_27 : f32 to vector<8x1xf32>
      %39 = arith.mulf %38, %37 : vector<8x1xf32>
      %c0_28 = arith.constant 0 : index
      %c0_29 = arith.constant 0 : index
      %40 = vector.load %arg7[%c0_28, %c0_29] : memref<8x1xf32, #tpu.memory_space<vmem>>, vector<8x1xf32>
      tpu.vector_store %arg7[%c0_28, %c0_29], %39 {strides = array<i32>} : memref<8x1xf32, #tpu.memory_space<vmem>>, vector<8x1xf32>,
    } else {
    }
    return
  }
  func.func @transform_0(%arg0: i32, %arg1: i32) -> (i32, i32) {
    %c0_i32 = arith.constant 0 : i32
    %c0_i32_0 = arith.constant 0 : i32
    return %arg0, %c0_i32 : i32, i32
  }
  func.func @transform_1(%arg0: i32, %arg1: i32) -> (i32, i32) {
    %c0_i32 = arith.constant 0 : i32
    %c0_i32_0 = arith.constant 0 : i32
    return %c0_i32, %arg1 : i32, i32
  }
  func.func @transform_2(%arg0: i32, %arg1: i32) -> (i32, i32) {
    %c0_i32 = arith.constant 0 : i32
    %c0_i32_0 = arith.constant 0 : i32
    return %c0_i32, %arg1 : i32, i32
  }
  func.func @transform_3(%arg0: i32, %arg1: i32) -> (i32, i32) {
    %c0_i32 = arith.constant 0 : i32
    %c0_i32_0 = arith.constant 0 : i32
    return %arg0, %c0_i32 : i32, i32
  }
  func.func @transform_4(%arg0: i32, %arg1: i32) -> (i32, i32) {
    %c0_i32 = arith.constant 0 : i32
    %c0_i32_0 = arith.constant 0 : i32
    return %arg0, %c0_i32 : i32, i32
  }
  func.func @transform_5(%arg0: i32, %arg1: i32) -> (i32, i32) {
    %c0_i32 = arith.constant 0 : i32
    %c0_i32_0 = arith.constant 0 : i32
    return %arg0, %c0_i32 : i32, i32
  }
}

</mosaic_0001>

<llo_original>
// kernel: tpu_custom_call.1
$region0: #{tpu_custom_call.1}
  #allocation0 [shape = 'u32[]', space=smem, size = 0x4, offset = 0x4, fixed_abs, tag = 'smem constant byte address 0x4 - core index']
  #allocation1 [shape = 'u32[144,128]{1,0:T(1,128)}', space=vmem, size = 0x12000, scoped, tag = 'internal scratch']
  #allocation2 [shape = 'f32[8,1]{1,0:T(8,128)}', space=vmem, size = 0x1000, scoped, tag = 'scratch operand']
  #allocation3 [shape = 'f32[8,1]{1,0:T(8,128)}', space=vmem, size = 0x1000, scoped, tag = 'scratch operand']
  %s0 = inlined_call_operand.vmem [shape: bf16[8,128], index: 0, kind: input, shape index: {}]
  %s1 = inlined_call_operand.hbm [shape: bf16[128,128], index: 1, kind: input, shape index: {}]
  %s2 = inlined_call_operand.vmem [shape: f32[1,128], index: 2, kind: input, shape index: {}]
  %s3 = inlined_call_operand.vmem [shape: f32[8,1], index: 3, kind: input, shape index: {}]
  %s4 = inlined_call_operand.vmem [shape: f32[8,1], index: 4, kind: input, shape index: {}]
  %s5 = inlined_call_operand.vmem [shape: f32[8,1], index: 5, kind: output, shape index: {}]
  %s6 = sld [smem:[#allocation0]]
  $region42: #{tpu_custom_call.1} parent=0
    _
  %s8 = ssub.s32 1, %s6
  %s9 = scalar_select 0, %s8, %s6
  $region1: #{tpu_custom_call.1} parent=0
    #allocation4 [shape = 'u8[32768]{0}', space=vmem, size = 0x8000, scoped, tag = 'input window, operand 1, single buffered']
    #allocation5 [shape = 's32[1]{0}', space=sflag, size = 0x4, scoped, tag = 'scoped memory for tpu_custom_call.1']
    %10 = vsyncpa [#allocation5], 0
    // Predicated region
    $region2: #{tpu_custom_call.1} parent=1 // pred_check
      _
    $region3: #{tpu_custom_call.1} parent=1 // pred_check_branch
      %12 = sbr.rel (0) target = $region5
    $region4: #{tpu_custom_call.1} parent=1 // pred_region
      _
    $region5: #{tpu_custom_call.1} parent=1 // pred_fallthru
      _
    // Predicated region
    $region6: #{tpu_custom_call.1} parent=1 // pred_check
      _
    $region7: #{tpu_custom_call.1} parent=1 // pred_check_branch
      %14 = sbr.rel (0) target = $region9
    $region8: #{tpu_custom_call.1} parent=1 // pred_region
      %s16 = ssub.s32 1024, 1024
      %17 = vsyncadd [#allocation5], %s16
      %s18 = sshll.u32 [#allocation4], 4
      %s19 = int_to_ptr.vmem [resolvable:$true] %s18
      %24 = dma.hbm_to_vmem [thread:$0]  %s1, 1024, %s19, [#allocation5], 64, 64, 4
    $region9: #{tpu_custom_call.1} parent=1 // pred_fallthru
      _
    // Predicated region
    $region10: #{tpu_custom_call.1} parent=1 // pred_check
      _
    $region11: #{tpu_custom_call.1} parent=1 // pred_check_branch
      %26 = sbr.rel (0) target = $region13
    $region12: #{tpu_custom_call.1} parent=1 // pred_region
      _
    $region13: #{tpu_custom_call.1} parent=1 // pred_fallthru
      _
    // Predicated region
    $region14: #{tpu_custom_call.1} parent=1 // pred_check
      _
    $region15: #{tpu_custom_call.1} parent=1 // pred_check_branch
      %28 = sbr.rel (0) target = $region17
    $region16: #{tpu_custom_call.1} parent=1 // pred_region
      _
    $region17: #{tpu_custom_call.1} parent=1 // pred_fallthru
      _
    // Predicated region
    $region18: #{tpu_custom_call.1} parent=1 // pred_check
      _
    $region19: #{tpu_custom_call.1} parent=1 // pred_check_branch
      %30 = sbr.rel (0) target = $region21
    $region20: #{tpu_custom_call.1} parent=1 // pred_region
      _
    $region21: #{tpu_custom_call.1} parent=1 // pred_fallthru
      _
    // Predicated region
    $region22: #{tpu_custom_call.1} parent=1 // pred_check
      _
    $region23: #{tpu_custom_call.1} parent=1 // pred_check_branch
      %32 = sbr.rel (0) target = $region25
    $region24: #{tpu_custom_call.1} parent=1 // pred_region
      %33 = dma.done [#allocation5], 1024
    $region25: #{tpu_custom_call.1} parent=1 // pred_fallthru
      _
    %p35 = scmp.eq.s32.totalorder 0, 0
    // Predicated region
    $region26: #{tpu_custom_call.1} parent=1 // pred_check
      %p36 = pneg %p35
    $region27: #{tpu_custom_call.1} parent=1 // pred_check_branch
      %38 = sbr.rel (%p36) target = $region29
    $region28: #{tpu_custom_call.1} parent=1 // pred_region
      %vm39 = vcmask 7168
      %40 = vst.msk [vmem:[#allocation2] sm:$0xff] %vm39, -1e+30
      %41 = vst.msk [vmem:[#allocation3] sm:$0xff] %vm39, 0.0
    $region29: #{tpu_custom_call.1} parent=1 // pred_fallthru
      _
    %v42 = vld [vmem:[%s0] sm:$0xf]
    %v43 = vld [vmem:[#allocation4] sm:$0xf]
    %v44 = vld [vmem:[#allocation4 + $0x4] sm:$0xf]
    %v45 = vld [vmem:[#allocation4 + $0x8] sm:$0xf]
    %v46 = vld [vmem:[#allocation4 + $0xc] sm:$0xf]
    %v47 = vld [vmem:[#allocation4 + $0x10] sm:$0xf]
    %v48 = vld [vmem:[#allocation4 + $0x14] sm:$0xf]
    %v49 = vld [vmem:[#allocation4 + $0x18] sm:$0xf]
    %v50 = vld [vmem:[#allocation4 + $0x1c] sm:$0xf]
    %v51 = vld [vmem:[#allocation4 + $0x20] sm:$0xf]
    %v52 = vld [vmem:[#allocation4 + $0x24] sm:$0xf]
    %v53 = vld [vmem:[#allocation4 + $0x28] sm:$0xf]
    %v54 = vld [vmem:[#allocation4 + $0x2c] sm:$0xf]
    %v55 = vld [vmem:[#allocation4 + $0x30] sm:$0xf]
    %v56 = vld [vmem:[#allocation4 + $0x34] sm:$0xf]
    %v57 = vld [vmem:[#allocation4 + $0x38] sm:$0xf]
    %v58 = vld [vmem:[#allocation4 + $0x3c] sm:$0xf]
    %v59 = vld [vmem:[%s2] sm:$0x1]
    %v61 = vlaneseq
    %v62 = vshrl.u32 %v61, 7
    %v63 = vsub.s32 0, %v62
    %v64 = vrot.slane %v59, %v63
    %v82 = vunpack.c.l.b16 %v43
    %v83 = vunpack.c.l.b16 %v44
    %v84 = vunpack.c.l.b16 %v45
    %v85 = vunpack.c.l.b16 %v46
    %v86 = vunpack.c.l.b16 %v47
    %v87 = vunpack.c.l.b16 %v48
    %v88 = vunpack.c.l.b16 %v49
    %v89 = vunpack.c.l.b16 %v50
    %v90 = vunpack.c.l.b16 %v51
    %v91 = vunpack.c.l.b16 %v52
    %v92 = vunpack.c.l.b16 %v53
    %v93 = vunpack.c.l.b16 %v54
    %v94 = vunpack.c.l.b16 %v55
    %v95 = vunpack.c.l.b16 %v56
    %v96 = vunpack.c.l.b16 %v57
    %v97 = vunpack.c.l.b16 %v58
    %v98 = vpack.c.b16 %v83, %v82
    %v99 = vpack.c.b16 %v85, %v84
    %v100 = vpack.c.b16 %v87, %v86
    %v101 = vpack.c.b16 %v89, %v88
    %v102 = vpack.c.b16 %v91, %v90
    %v103 = vpack.c.b16 %v93, %v92
    %v104 = vpack.c.b16 %v95, %v94
    %v105 = vpack.c.b16 %v97, %v96
    %114 = vmatprep.subr.bf16.mxu0 0
    %115 = vmatpush1.bf16.msra.mxu0 %v105
    %116 = vmatprep.subr.bf16.mxu0 0
    %117 = vmatpush1.bf16.msra.mxu0 %v104
    %118 = vmatprep.subr.bf16.mxu0 0
    %119 = vmatpush1.bf16.msra.mxu0 %v103
    %120 = vmatprep.subr.bf16.mxu0 0
    %121 = vmatpush1.bf16.msra.mxu0 %v102
    %122 = vmatprep.subr.bf16.mxu0 0
    %123 = vmatpush1.bf16.msra.mxu0 %v101
    %124 = vmatprep.subr.bf16.mxu0 0
    %125 = vmatpush1.bf16.msra.mxu0 %v100
    %126 = vmatprep.subr.bf16.mxu0 0
    %127 = vmatpush1.bf16.msra.mxu0 %v99
    %128 = vmatprep.subr.bf16.mxu0 0
    %129 = vmatpush1.bf16.msra.mxu0 %v98
    %130 = vmatprep.subr.bf16.mxu0 0
    %131 = vmatpush2.bf16.msra.mxu0 0
    %132 = vmatprep.subr.bf16.mxu0 0
    %133 = vmatpush2.bf16.msra.mxu0 0
    %134 = vmatprep.subr.bf16.mxu0 0
    %135 = vmatpush2.bf16.msra.mxu0 0
    %136 = vmatprep.subr.bf16.mxu0 0
    %137 = vmatpush2.bf16.msra.mxu0 0
    %138 = vmatprep.subr.bf16.mxu0 0
    %139 = vmatpush2.bf16.msra.mxu0 0
    %140 = vmatprep.subr.bf16.mxu0 0
    %141 = vmatpush2.bf16.msra.mxu0 0
    %142 = vmatprep.subr.bf16.mxu0 0
    %143 = vmatpush2.bf16.msra.mxu0 0
    %144 = vmatprep.subr.bf16.mxu0 0
    %145 = vmatpush2.bf16.msra.mxu0 0
    %146 = vmatprep.mubr.bf16.mxu0 0
    %147 = vmatmul.mubr.bf16.gmra.mxu0 %v42
    %v148 = vpop.f32.mrf.mxu0
    %v149 = vadd.f32 %v64, %v148
    %v150 = vpop.f32.mrf.mxu0
    %v151 = vpop.f32.mrf.mxu0
    %v152 = vpop.f32.mrf.mxu0
    %153 = vdwg.mxu0
    %v154 = vld [vmem:[#allocation2] sm:$0xff]
    %155 = vmax.xlane.f32.xlu0 %v149
    %v156 = vpop.xlane.xlu0 %155
    %v157 = vmax.f32 %v154, %v156
    %v158 = vsub.f32 %v154, %v157
    %v159 = vmul.f32 %v158, 1.442695
    %v160 = vpow.pop %v159
    %v161 = vld [vmem:[#allocation3] sm:$0xff]
    %v162 = vmul.f32 %v160, %v161
    %164 = vset.pattern.permute.xlu0 0
    %165 = vperm.xlu0 %164, %v157
    %v166 = vpop.permute.xlu0 %165
    %v168 = vsub.f32 %v149, %v166
    %v169 = vmul.f32 %v168, 1.442695
    %v170 = vpow.pop %v169
    %171 = vadd.xlane.f32.xlu0 %v170
    %v172 = vpop.xlane.xlu0 %171
    %v173 = vadd.f32 %v162, %v172
    %vm174 = vcmask 7168
    %175 = vst.msk [vmem:[#allocation3] sm:$0xff] %vm174, %v173
    %176 = vst.msk [vmem:[#allocation2] sm:$0xff] %vm174, %v157
    // Predicated region
    $region30: #{tpu_custom_call.1} parent=1 // pred_check
      %p177 = pneg %p35
    $region31: #{tpu_custom_call.1} parent=1 // pred_check_branch
      %179 = sbr.rel (%p177) target = $region33
    $region32: #{tpu_custom_call.1} parent=1 // pred_region
      %v180 = vld [vmem:[#allocation2] sm:$0xff]
      %v181 = vld [vmem:[#allocation3] sm:$0xff]
      %v182 = vadd.f32 %v181, 1e-06
      %v183 = vlog2.pop %v182
      %v184 = vmul.f32 %v183, 0.6931472
      %v185 = vadd.f32 %v180, %v184
      %v186 = vld [vmem:[%s3] sm:$0xff]
      %v187 = vld [vmem:[%s4] sm:$0xff]
      %v188 = vmul.f32 %v187, %v185
      %v189 = vsub.f32 %v186, %v188
      %190 = vst.msk [vmem:[%s5] sm:$0xff] %vm174, %v189
    $region33: #{tpu_custom_call.1} parent=1 // pred_fallthru
      _
    // Predicated region
    $region34: #{tpu_custom_call.1} parent=1 // pred_check
      _
    $region35: #{tpu_custom_call.1} parent=1 // pred_check_branch
      %192 = sbr.rel (0) target = $region37
    $region36: #{tpu_custom_call.1} parent=1 // pred_region
      _
    $region37: #{tpu_custom_call.1} parent=1 // pred_fallthru
      _
    // Predicated region
    $region38: #{tpu_custom_call.1} parent=1 // pred_check
      _
    $region39: #{tpu_custom_call.1} parent=1 // pred_check_branch
      %194 = sbr.rel (0) target = $region41
    $region40: #{tpu_custom_call.1} parent=1 // pred_region
      _
    $region41: #{tpu_custom_call.1} parent=1 // pred_fallthru
      _
    %195 = vsyncpa [#allocation5], 1

</llo_original>
